<compile_context>
chip_gen: v5e
topology: v5e:2x2
jax: 0.10.0
libtpu: 0.0.40
codegen_flags: <defaults>
</compile_context>

<pallas_src>
import jax
import jax.numpy as jnp
from jax.experimental import pallas as pl
from jax.experimental.pallas import tpu as pltpu


MAX_TILE_B = 8192  # batch columns per grid step; multiple of 128


def _round_up(n, m):
    return ((n + m - 1) // m) * m


def mlp_kernel(x_ref,            # VMEM (8, TB)  bf16   x^T tile
               m_ref,            # VMEM (6, TB)  bf16   pre-scaled dropout mask {0, 2}
               w1_ref, b1_ref,   # VMEM (6, 8), (6, 1)  f32  (torch layout: out, in)
               w2_ref, b2_ref,   # VMEM (4, 6), (4, 1)  f32
               w3_ref, b3_ref,   # VMEM (1, 4), (1, 1)  f32
               o_ref):           # VMEM (1, TB)  f32   y^T tile
    tb = x_ref.shape[1]
    x = x_ref[...].astype(jnp.float32)        # (8, TB)
    mask = m_ref[...].astype(jnp.float32)     # (6, TB), values in {0., 2.}

    # ---- Layer 1 + ReLU + dropout(p=0.5) ---------------------------------
    # h1[j, :] = relu(b1[j] + sum_k w1[j, k] * x[k, :]) * mask[j, :]
    h1 = jnp.zeros((w1_ref.shape[0], tb), jnp.float32)
    for k in range(w1_ref.shape[1]):          # K = 8, unrolled VPU MACs (no MXU)
        h1 = h1 + w1_ref[:, k:k + 1] * x[k:k + 1, :]
    h1 = jnp.maximum(h1 + b1_ref[...], 0.0) * mask

    # ---- Layer 2 + ReLU ---------------------------------------------------
    h2 = jnp.zeros((w2_ref.shape[0], tb), jnp.float32)
    for k in range(w2_ref.shape[1]):          # K = 6
        h2 = h2 + w2_ref[:, k:k + 1] * h1[k:k + 1, :]
    h2 = jnp.maximum(h2 + b2_ref[...], 0.0)

    # NOTE: the reference's second dropout output (out4) is dead code; l3
    # consumes the pre-dropout activation, so we feed h2 directly.

    # ---- Layer 3 + sigmoid -------------------------------------------------
    z = jnp.zeros((w3_ref.shape[0], tb), jnp.float32)
    for k in range(w3_ref.shape[1]):          # K = 4
        z = z + w3_ref[:, k:k + 1] * h2[k:k + 1, :]
    z = z + b3_ref[...]
    o_ref[...] = jax.nn.sigmoid(z).astype(o_ref.dtype)


@jax.jit
def mlp_forward(x, w1, b1, w2, b2, w3, b3, dropout_key):
    """x: (batch, 8). Weights in torch layout (out, in); biases as (out, 1)."""
    batch = x.shape[0]

    # Dropout(p=0.5) keep-mask, pre-scaled by 1/(1-p)=2, in the transposed
    # (features, batch) layout, streamed as bf16.
    keep = jax.random.bernoulli(dropout_key, 0.5, (w1.shape[0], batch))
    mask_t = keep.astype(jnp.bfloat16) * 2.0

    # Lane-dense layout: batch on the 128-lane (last) axis; bf16 halves HBM traffic.
    x_t = x.T.astype(jnp.bfloat16)                                  # (8, batch)

    tile_b = min(MAX_TILE_B, 128 * pl.cdiv(batch, 128))
    b_pad = tile_b * pl.cdiv(batch, tile_b)
    if b_pad != batch:
        x_t = jnp.pad(x_t, ((0, 0), (0, b_pad - batch)))
        mask_t = jnp.pad(mask_t, ((0, 0), (0, b_pad - batch)))

    col_spec = lambda shape: pl.BlockSpec(shape, lambda i: (0, i))   # tiled over batch
    res_spec = lambda shape: pl.BlockSpec(shape, lambda i: (0, 0))   # VMEM-resident

    y_t = pl.pallas_call(
        mlp_kernel,
        out_shape=jax.ShapeDtypeStruct((1, b_pad), jnp.float32),
        grid=(b_pad // tile_b,),
        in_specs=[
            col_spec((8, tile_b)),            # x^T tile
            col_spec((6, tile_b)),            # dropout mask tile
            res_spec(w1.shape), res_spec(b1.shape),
            res_spec(w2.shape), res_spec(b2.shape),
            res_spec(w3.shape), res_spec(b3.shape),
        ],
        out_specs=col_spec((1, tile_b)),      # lane-dense output -> unmasked stores
        compiler_params=pltpu.CompilerParams(
            dimension_semantics=("parallel",),
            vmem_limit_bytes=64 * 1024 * 1024,
        ),
    )(x_t, mask_t, w1, b1, w2, b2, w3, b3)

    return y_t[0, :batch].reshape(batch, 1)


def init_params(key):
    """torch.nn.Linear-style init: U(-1/sqrt(fan_in), +1/sqrt(fan_in)).
    Weights in torch layout (out_features, in_features); biases as (out, 1)."""
    dims = [(6, 8), (4, 6), (1, 4)]
    params = []
    for fan_out, fan_in in dims:
        key, kw, kb = jax.random.split(key, 3)
        bound = 1.0 / (fan_in ** 0.5)
        w = jax.random.uniform(kw, (fan_out, fan_in), jnp.float32, -bound, bound)
        b = jax.random.uniform(kb, (fan_out, 1), jnp.float32, -bound, bound)
        params += [w, b]
    return params


if __name__ == "__main__":
    root = jax.random.PRNGKey(0)
    kparams, kx, kdrop = jax.random.split(root, 3)

    batch = 256
    x = jax.random.normal(kx, (batch, 8), dtype=jnp.float32)
    w1, b1, w2, b2, w3, b3 = init_params(kparams)

    y = mlp_forward(x, w1, b1, w2, b2, w3, b3, kdrop)
    y = jax.block_until_ready(y)

    assert y.shape == (batch, 1)
    assert bool(jnp.all(jnp.isfinite(y)))
    assert bool(jnp.all((y >= 0.0) & (y <= 1.0)))
    print("KERNEL_OK")
</pallas_src>

<mosaic_0001>
module attributes {stable_mosaic.version = 11 : i64} {
  func.func @mlp_kernel(%arg0: i32, %arg1: memref<8x256xbf16, #tpu.memory_space<vmem>>, %arg2: memref<6x256xbf16, #tpu.memory_space<vmem>>, %arg3: memref<6x8xf32, #tpu.memory_space<vmem>>, %arg4: memref<6x1xf32, #tpu.memory_space<vmem>>, %arg5: memref<4x6xf32, #tpu.memory_space<vmem>>, %arg6: memref<4x1xf32, #tpu.memory_space<vmem>>, %arg7: memref<1x4xf32, #tpu.memory_space<vmem>>, %arg8: memref<1x1xf32, #tpu.memory_space<vmem>>, %arg9: memref<1x256xf32, #tpu.memory_space<vmem>>) attributes {dimension_semantics = [#tpu.dimension_semantics<parallel>], iteration_bounds = array<i64: 1>, scalar_prefetch = 0 : i64, scratch_operands = 0 : i64, tpu.core_type = #tpu.core_type<tc>, window_params = [{transform_indices = @transform_0, window_bounds = array<i64: 8, 256>}, {transform_indices = @transform_1, window_bounds = array<i64: 6, 256>}, {pipeline_mode = #tpu.pipeline_mode<synchronous>, transform_indices = @transform_2, window_bounds = array<i64: 6, 8>}, {pipeline_mode = #tpu.pipeline_mode<synchronous>, transform_indices = @transform_3, window_bounds = array<i64: 6, 1>}, {pipeline_mode = #tpu.pipeline_mode<synchronous>, transform_indices = @transform_4, window_bounds = array<i64: 4, 6>}, {pipeline_mode = #tpu.pipeline_mode<synchronous>, transform_indices = @transform_5, window_bounds = array<i64: 4, 1>}, {pipeline_mode = #tpu.pipeline_mode<synchronous>, transform_indices = @transform_6, window_bounds = array<i64: 1, 4>}, {pipeline_mode = #tpu.pipeline_mode<synchronous>, transform_indices = @transform_7, window_bounds = array<i64: 1, 1>}, {transform_indices = @transform_8, window_bounds = array<i64: 1, 256>}]} {
    %c0 = arith.constant 0 : index
    %c0_0 = arith.constant 0 : index
    %0 = vector.load %arg1[%c0, %c0_0] : memref<8x256xbf16, #tpu.memory_space<vmem>>, vector<8x256xbf16>
    %1 = arith.extf %0 : vector<8x256xbf16> to vector<8x256xf32>
    %c0_1 = arith.constant 0 : index
    %c0_2 = arith.constant 0 : index
    %2 = vector.load %arg2[%c0_1, %c0_2] : memref<6x256xbf16, #tpu.memory_space<vmem>>, vector<6x256xbf16>
    %3 = arith.extf %2 : vector<6x256xbf16> to vector<6x256xf32>
    %cst = arith.constant 0.000000e+00 : f32
    %4 = vector.broadcast %cst : f32 to vector<6x256xf32>
    %c0_3 = arith.constant 0 : index
    %c0_4 = arith.constant 0 : index
    %5 = vector.load %arg3[%c0_3, %c0_4] : memref<6x8xf32, #tpu.memory_space<vmem>>, vector<6x1xf32>
    %6 = vector.extract_strided_slice %1 {offsets = [0, 0], sizes = [1, 256], strides = [1, 1]} : vector<8x256xf32> to vector<1x256xf32>
    %7 = vector.broadcast %5 : vector<6x1xf32> to vector<6x256xf32>
    %8 = vector.broadcast %6 : vector<1x256xf32> to vector<6x256xf32>
    %9 = arith.mulf %7, %8 : vector<6x256xf32>
    %10 = arith.addf %4, %9 : vector<6x256xf32>
    %c0_5 = arith.constant 0 : index
    %c1 = arith.constant 1 : index
    %11 = vector.load %arg3[%c0_5, %c1] : memref<6x8xf32, #tpu.memory_space<vmem>>, vector<6x1xf32>
    %12 = vector.extract_strided_slice %1 {offsets = [1, 0], sizes = [1, 256], strides = [1, 1]} : vector<8x256xf32> to vector<1x256xf32>
    %13 = vector.broadcast %11 : vector<6x1xf32> to vector<6x256xf32>
    %14 = vector.broadcast %12 : vector<1x256xf32> to vector<6x256xf32>
    %15 = arith.mulf %13, %14 : vector<6x256xf32>
    %16 = arith.addf %10, %15 : vector<6x256xf32>
    %c0_6 = arith.constant 0 : index
    %c2 = arith.constant 2 : index
    %17 = vector.load %arg3[%c0_6, %c2] : memref<6x8xf32, #tpu.memory_space<vmem>>, vector<6x1xf32>
    %18 = vector.extract_strided_slice %1 {offsets = [2, 0], sizes = [1, 256], strides = [1, 1]} : vector<8x256xf32> to vector<1x256xf32>
    %19 = vector.broadcast %17 : vector<6x1xf32> to vector<6x256xf32>
    %20 = vector.broadcast %18 : vector<1x256xf32> to vector<6x256xf32>
    %21 = arith.mulf %19, %20 : vector<6x256xf32>
    %22 = arith.addf %16, %21 : vector<6x256xf32>
    %c0_7 = arith.constant 0 : index
    %c3 = arith.constant 3 : index
    %23 = vector.load %arg3[%c0_7, %c3] : memref<6x8xf32, #tpu.memory_space<vmem>>, vector<6x1xf32>
    %24 = vector.extract_strided_slice %1 {offsets = [3, 0], sizes = [1, 256], strides = [1, 1]} : vector<8x256xf32> to vector<1x256xf32>
    %25 = vector.broadcast %23 : vector<6x1xf32> to vector<6x256xf32>
    %26 = vector.broadcast %24 : vector<1x256xf32> to vector<6x256xf32>
    %27 = arith.mulf %25, %26 : vector<6x256xf32>
    %28 = arith.addf %22, %27 : vector<6x256xf32>
    %c0_8 = arith.constant 0 : index
    %c4 = arith.constant 4 : index
    %29 = vector.load %arg3[%c0_8, %c4] : memref<6x8xf32, #tpu.memory_space<vmem>>, vector<6x1xf32>
    %30 = vector.extract_strided_slice %1 {offsets = [4, 0], sizes = [1, 256], strides = [1, 1]} : vector<8x256xf32> to vector<1x256xf32>
    %31 = vector.broadcast %29 : vector<6x1xf32> to vector<6x256xf32>
    %32 = vector.broadcast %30 : vector<1x256xf32> to vector<6x256xf32>
    %33 = arith.mulf %31, %32 : vector<6x256xf32>
    %34 = arith.addf %28, %33 : vector<6x256xf32>
    %c0_9 = arith.constant 0 : index
    %c5 = arith.constant 5 : index
    %35 = vector.load %arg3[%c0_9, %c5] : memref<6x8xf32, #tpu.memory_space<vmem>>, vector<6x1xf32>
    %36 = vector.extract_strided_slice %1 {offsets = [5, 0], sizes = [1, 256], strides = [1, 1]} : vector<8x256xf32> to vector<1x256xf32>
    %37 = vector.broadcast %35 : vector<6x1xf32> to vector<6x256xf32>
    %38 = vector.broadcast %36 : vector<1x256xf32> to vector<6x256xf32>
    %39 = arith.mulf %37, %38 : vector<6x256xf32>
    %40 = arith.addf %34, %39 : vector<6x256xf32>
    %c0_10 = arith.constant 0 : index
    %c6 = arith.constant 6 : index
    %41 = vector.load %arg3[%c0_10, %c6] : memref<6x8xf32, #tpu.memory_space<vmem>>, vector<6x1xf32>
    %42 = vector.extract_strided_slice %1 {offsets = [6, 0], sizes = [1, 256], strides = [1, 1]} : vector<8x256xf32> to vector<1x256xf32>
    %43 = vector.broadcast %41 : vector<6x1xf32> to vector<6x256xf32>
    %44 = vector.broadcast %42 : vector<1x256xf32> to vector<6x256xf32>
    %45 = arith.mulf %43, %44 : vector<6x256xf32>
    %46 = arith.addf %40, %45 : vector<6x256xf32>
    %c0_11 = arith.constant 0 : index
    %c7 = arith.constant 7 : index
    %47 = vector.load %arg3[%c0_11, %c7] : memref<6x8xf32, #tpu.memory_space<vmem>>, vector<6x1xf32>
    %48 = vector.extract_strided_slice %1 {offsets = [7, 0], sizes = [1, 256], strides = [1, 1]} : vector<8x256xf32> to vector<1x256xf32>
    %49 = vector.broadcast %47 : vector<6x1xf32> to vector<6x256xf32>
    %50 = vector.broadcast %48 : vector<1x256xf32> to vector<6x256xf32>
    %51 = arith.mulf %49, %50 : vector<6x256xf32>
    %52 = arith.addf %46, %51 : vector<6x256xf32>
    %c0_12 = arith.constant 0 : index
    %c0_13 = arith.constant 0 : index
    %53 = vector.load %arg4[%c0_12, %c0_13] : memref<6x1xf32, #tpu.memory_space<vmem>>, vector<6x1xf32>
    %54 = vector.broadcast %53 : vector<6x1xf32> to vector<6x256xf32>
    %55 = arith.addf %52, %54 : vector<6x256xf32>
    %cst_14 = arith.constant 0.000000e+00 : f32
    %56 = vector.broadcast %cst_14 : f32 to vector<6x256xf32>
    %57 = arith.maximumf %55, %56 : vector<6x256xf32>
    %58 = arith.mulf %57, %3 : vector<6x256xf32>
    %cst_15 = arith.constant 0.000000e+00 : f32
    %59 = vector.broadcast %cst_15 : f32 to vector<4x256xf32>
    %c0_16 = arith.constant 0 : index
    %c0_17 = arith.constant 0 : index
    %60 = vector.load %arg5[%c0_16, %c0_17] : memref<4x6xf32, #tpu.memory_space<vmem>>, vector<4x1xf32>
    %61 = vector.extract_strided_slice %58 {offsets = [0, 0], sizes = [1, 256], strides = [1, 1]} : vector<6x256xf32> to vector<1x256xf32>
    %62 = vector.broadcast %60 : vector<4x1xf32> to vector<4x256xf32>
    %63 = vector.broadcast %61 : vector<1x256xf32> to vector<4x256xf32>
    %64 = arith.mulf %62, %63 : vector<4x256xf32>
    %65 = arith.addf %59, %64 : vector<4x256xf32>
    %c0_18 = arith.constant 0 : index
    %c1_19 = arith.constant 1 : index
    %66 = vector.load %arg5[%c0_18, %c1_19] : memref<4x6xf32, #tpu.memory_space<vmem>>, vector<4x1xf32>
    %67 = vector.extract_strided_slice %58 {offsets = [1, 0], sizes = [1, 256], strides = [1, 1]} : vector<6x256xf32> to vector<1x256xf32>
    %68 = vector.broadcast %66 : vector<4x1xf32> to vector<4x256xf32>
    %69 = vector.broadcast %67 : vector<1x256xf32> to vector<4x256xf32>
    %70 = arith.mulf %68, %69 : vector<4x256xf32>
    %71 = arith.addf %65, %70 : vector<4x256xf32>
    %c0_20 = arith.constant 0 : index
    %c2_21 = arith.constant 2 : index
    %72 = vector.load %arg5[%c0_20, %c2_21] : memref<4x6xf32, #tpu.memory_space<vmem>>, vector<4x1xf32>
    %73 = vector.extract_strided_slice %58 {offsets = [2, 0], sizes = [1, 256], strides = [1, 1]} : vector<6x256xf32> to vector<1x256xf32>
    %74 = vector.broadcast %72 : vector<4x1xf32> to vector<4x256xf32>
    %75 = vector.broadcast %73 : vector<1x256xf32> to vector<4x256xf32>
    %76 = arith.mulf %74, %75 : vector<4x256xf32>
    %77 = arith.addf %71, %76 : vector<4x256xf32>
    %c0_22 = arith.constant 0 : index
    %c3_23 = arith.constant 3 : index
    %78 = vector.load %arg5[%c0_22, %c3_23] : memref<4x6xf32, #tpu.memory_space<vmem>>, vector<4x1xf32>
    %79 = vector.extract_strided_slice %58 {offsets = [3, 0], sizes = [1, 256], strides = [1, 1]} : vector<6x256xf32> to vector<1x256xf32>
    %80 = vector.broadcast %78 : vector<4x1xf32> to vector<4x256xf32>
    %81 = vector.broadcast %79 : vector<1x256xf32> to vector<4x256xf32>
    %82 = arith.mulf %80, %81 : vector<4x256xf32>
    %83 = arith.addf %77, %82 : vector<4x256xf32>
    %c0_24 = arith.constant 0 : index
    %c4_25 = arith.constant 4 : index
    %84 = vector.load %arg5[%c0_24, %c4_25] : memref<4x6xf32, #tpu.memory_space<vmem>>, vector<4x1xf32>
    %85 = vector.extract_strided_slice %58 {offsets = [4, 0], sizes = [1, 256], strides = [1, 1]} : vector<6x256xf32> to vector<1x256xf32>
    %86 = vector.broadcast %84 : vector<4x1xf32> to vector<4x256xf32>
    %87 = vector.broadcast %85 : vector<1x256xf32> to vector<4x256xf32>
    %88 = arith.mulf %86, %87 : vector<4x256xf32>
    %89 = arith.addf %83, %88 : vector<4x256xf32>
    %c0_26 = arith.constant 0 : index
    %c5_27 = arith.constant 5 : index
    %90 = vector.load %arg5[%c0_26, %c5_27] : memref<4x6xf32, #tpu.memory_space<vmem>>, vector<4x1xf32>
    %91 = vector.extract_strided_slice %58 {offsets = [5, 0], sizes = [1, 256], strides = [1, 1]} : vector<6x256xf32> to vector<1x256xf32>
    %92 = vector.broadcast %90 : vector<4x1xf32> to vector<4x256xf32>
    %93 = vector.broadcast %91 : vector<1x256xf32> to vector<4x256xf32>
    %94 = arith.mulf %92, %93 : vector<4x256xf32>
    %95 = arith.addf %89, %94 : vector<4x256xf32>
    %c0_28 = arith.constant 0 : index
    %c0_29 = arith.constant 0 : index
    %96 = vector.load %arg6[%c0_28, %c0_29] : memref<4x1xf32, #tpu.memory_space<vmem>>, vector<4x1xf32>
    %97 = vector.broadcast %96 : vector<4x1xf32> to vector<4x256xf32>
    %98 = arith.addf %95, %97 : vector<4x256xf32>
    %cst_30 = arith.constant 0.000000e+00 : f32
    %99 = vector.broadcast %cst_30 : f32 to vector<4x256xf32>
    %100 = arith.maximumf %98, %99 : vector<4x256xf32>
    %cst_31 = arith.constant 0.000000e+00 : f32
    %101 = vector.broadcast %cst_31 : f32 to vector<1x256xf32>
    %c0_32 = arith.constant 0 : index
    %c0_33 = arith.constant 0 : index
    %102 = vector.load %arg7[%c0_32, %c0_33] : memref<1x4xf32, #tpu.memory_space<vmem>>, vector<1x1xf32>
    %103 = vector.extract_strided_slice %100 {offsets = [0, 0], sizes = [1, 256], strides = [1, 1]} : vector<4x256xf32> to vector<1x256xf32>
    %104 = vector.broadcast %102 : vector<1x1xf32> to vector<1x256xf32>
    %105 = arith.mulf %104, %103 : vector<1x256xf32>
    %106 = arith.addf %101, %105 : vector<1x256xf32>
    %c0_34 = arith.constant 0 : index
    %c1_35 = arith.constant 1 : index
    %107 = vector.load %arg7[%c0_34, %c1_35] : memref<1x4xf32, #tpu.memory_space<vmem>>, vector<1x1xf32>
    %108 = vector.extract_strided_slice %100 {offsets = [1, 0], sizes = [1, 256], strides = [1, 1]} : vector<4x256xf32> to vector<1x256xf32>
    %109 = vector.broadcast %107 : vector<1x1xf32> to vector<1x256xf32>
    %110 = arith.mulf %109, %108 : vector<1x256xf32>
    %111 = arith.addf %106, %110 : vector<1x256xf32>
    %c0_36 = arith.constant 0 : index
    %c2_37 = arith.constant 2 : index
    %112 = vector.load %arg7[%c0_36, %c2_37] : memref<1x4xf32, #tpu.memory_space<vmem>>, vector<1x1xf32>
    %113 = vector.extract_strided_slice %100 {offsets = [2, 0], sizes = [1, 256], strides = [1, 1]} : vector<4x256xf32> to vector<1x256xf32>
    %114 = vector.broadcast %112 : vector<1x1xf32> to vector<1x256xf32>
    %115 = arith.mulf %114, %113 : vector<1x256xf32>
    %116 = arith.addf %111, %115 : vector<1x256xf32>
    %c0_38 = arith.constant 0 : index
    %c3_39 = arith.constant 3 : index
    %117 = vector.load %arg7[%c0_38, %c3_39] : memref<1x4xf32, #tpu.memory_space<vmem>>, vector<1x1xf32>
    %118 = vector.extract_strided_slice %100 {offsets = [3, 0], sizes = [1, 256], strides = [1, 1]} : vector<4x256xf32> to vector<1x256xf32>
    %119 = vector.broadcast %117 : vector<1x1xf32> to vector<1x256xf32>
    %120 = arith.mulf %119, %118 : vector<1x256xf32>
    %121 = arith.addf %116, %120 : vector<1x256xf32>
    %c0_40 = arith.constant 0 : index
    %c0_41 = arith.constant 0 : index
    %122 = vector.load %arg8[%c0_40, %c0_41] : memref<1x1xf32, #tpu.memory_space<vmem>>, vector<1x1xf32>
    %123 = vector.broadcast %122 : vector<1x1xf32> to vector<1x256xf32>
    %124 = arith.addf %121, %123 : vector<1x256xf32>
    %125 = arith.negf %124 : vector<1x256xf32>
    %126 = math.exp %125 : vector<1x256xf32>
    %cst_42 = arith.constant 1.000000e+00 : f32
    %127 = vector.broadcast %cst_42 : f32 to vector<1x256xf32>
    %128 = arith.addf %127, %126 : vector<1x256xf32>
    %129 = arith.divf %127, %128 : vector<1x256xf32>
    %c0_43 = arith.constant 0 : index
    %c0_44 = arith.constant 0 : index
    %130 = vector.load %arg9[%c0_43, %c0_44] : memref<1x256xf32, #tpu.memory_space<vmem>>, vector<1x256xf32>
    tpu.vector_store %arg9[%c0_43, %c0_44], %129 {strides = array<i32>} : memref<1x256xf32, #tpu.memory_space<vmem>>, vector<1x256xf32>,
    return
  }
  func.func @transform_0(%arg0: i32) -> (i32, i32) {
    %c0_i32 = arith.constant 0 : i32
    %c0_i32_0 = arith.constant 0 : i32
    return %c0_i32, %arg0 : i32, i32
  }
  func.func @transform_1(%arg0: i32) -> (i32, i32) {
    %c0_i32 = arith.constant 0 : i32
    %c0_i32_0 = arith.constant 0 : i32
    return %c0_i32, %arg0 : i32, i32
  }
  func.func @transform_2(%arg0: i32) -> (i32, i32) {
    %c0_i32 = arith.constant 0 : i32
    %c0_i32_0 = arith.constant 0 : i32
    %c0_i32_1 = arith.constant 0 : i32
    return %c0_i32, %c0_i32_0 : i32, i32
  }
  func.func @transform_3(%arg0: i32) -> (i32, i32) {
    %c0_i32 = arith.constant 0 : i32
    %c0_i32_0 = arith.constant 0 : i32
    %c0_i32_1 = arith.constant 0 : i32
    return %c0_i32, %c0_i32_0 : i32, i32
  }
  func.func @transform_4(%arg0: i32) -> (i32, i32) {
    %c0_i32 = arith.constant 0 : i32
    %c0_i32_0 = arith.constant 0 : i32
    %c0_i32_1 = arith.constant 0 : i32
    return %c0_i32, %c0_i32_0 : i32, i32
  }
  func.func @transform_5(%arg0: i32) -> (i32, i32) {
    %c0_i32 = arith.constant 0 : i32
    %c0_i32_0 = arith.constant 0 : i32
    %c0_i32_1 = arith.constant 0 : i32
    return %c0_i32, %c0_i32_0 : i32, i32
  }
  func.func @transform_6(%arg0: i32) -> (i32, i32) {
    %c0_i32 = arith.constant 0 : i32
    %c0_i32_0 = arith.constant 0 : i32
    %c0_i32_1 = arith.constant 0 : i32
    return %c0_i32, %c0_i32_0 : i32, i32
  }
  func.func @transform_7(%arg0: i32) -> (i32, i32) {
    %c0_i32 = arith.constant 0 : i32
    %c0_i32_0 = arith.constant 0 : i32
    %c0_i32_1 = arith.constant 0 : i32
    return %c0_i32, %c0_i32_0 : i32, i32
  }
  func.func @transform_8(%arg0: i32) -> (i32, i32) {
    %c0_i32 = arith.constant 0 : i32
    %c0_i32_0 = arith.constant 0 : i32
    return %c0_i32, %arg0 : i32, i32
  }
}

</mosaic_0001>

<llo_original>
// kernel: mlp_forward.1
$region0: #{mlp_forward.1}
  #allocation0 [shape = 'u32[]', space=smem, size = 0x4, offset = 0x4, fixed_abs, tag = 'smem constant byte address 0x4 - core index']
  #allocation1 [shape = 'u32[72,128]{1,0:T(1,128)}', space=vmem, size = 0x9000, scoped, tag = 'internal scratch']
  #allocation2 [shape = 'f32[1,1]{1,0:T(1,128)S(1)}', space=vmem, size = 0x200, scoped, tag = 'scoped memory for mlp_forward.1']
  %s0 = inlined_call_operand.vmem [shape: bf16[8,256], index: 0, kind: input, shape index: {}]
  %s1 = inlined_call_operand.vmem [shape: bf16[6,256], index: 1, kind: input, shape index: {}]
  %s2 = inlined_call_operand.vmem [shape: f32[6,8], index: 2, kind: input, shape index: {}]
  %s3 = inlined_call_operand.vmem [shape: f32[6,1], index: 3, kind: input, shape index: {}]
  %s4 = inlined_call_operand.vmem [shape: f32[4,6], index: 4, kind: input, shape index: {}]
  %s5 = inlined_call_operand.vmem [shape: f32[4,1], index: 5, kind: input, shape index: {}]
  %s6 = inlined_call_operand.vmem [shape: f32[1,4], index: 6, kind: input, shape index: {}]
  %s7 = inlined_call_operand.<no memory space> [shape: f32[1,1], index: 7, kind: input, shape index: {}]
  %s8 = inlined_call_operand.hbm [shape: f32[1,256], index: 8, kind: output, shape index: {}]
  %s9 = sld [smem:[#allocation0]]
  $region42: #{mlp_forward.1} parent=0
    _
  %s11 = ssub.s32 1, %s9
  %s12 = scalar_select 0, %s11, %s9
  %v13 = vstv %s7
  %14 = vst [vmem:[#allocation2] sm:$0x1] %v13
  $region1: #{mlp_forward.1} parent=0
    #allocation3 [shape = 'u8[1024]{0}', space=vmem, size = 0x400, scoped, tag = 'output window, operand 0, single buffered']
    #allocation4 [shape = 's32[1]{0}', space=sflag, size = 0x4, scoped, tag = 'scoped memory for mlp_forward.1']
    %15 = vsyncpa [#allocation4], 0
    // Predicated region
    $region2: #{mlp_forward.1} parent=1 // pred_check
      _
    $region3: #{mlp_forward.1} parent=1 // pred_check_branch
      %17 = sbr.rel (0) target = $region5
    $region4: #{mlp_forward.1} parent=1 // pred_region
      _
    $region5: #{mlp_forward.1} parent=1 // pred_fallthru
      _
    // Predicated region
    $region6: #{mlp_forward.1} parent=1 // pred_check
      _
    $region7: #{mlp_forward.1} parent=1 // pred_check_branch
      %19 = sbr.rel (0) target = $region9
    $region8: #{mlp_forward.1} parent=1 // pred_region
      _
    $region9: #{mlp_forward.1} parent=1 // pred_fallthru
      _
    // Predicated region
    $region10: #{mlp_forward.1} parent=1 // pred_check
      _
    $region11: #{mlp_forward.1} parent=1 // pred_check_branch
      %21 = sbr.rel (0) target = $region13
    $region12: #{mlp_forward.1} parent=1 // pred_region
      _
    $region13: #{mlp_forward.1} parent=1 // pred_fallthru
      _
    // Predicated region
    $region14: #{mlp_forward.1} parent=1 // pred_check
      _
    $region15: #{mlp_forward.1} parent=1 // pred_check_branch
      %23 = sbr.rel (0) target = $region17
    $region16: #{mlp_forward.1} parent=1 // pred_region
      _
    $region17: #{mlp_forward.1} parent=1 // pred_fallthru
      _
    // Predicated region
    $region18: #{mlp_forward.1} parent=1 // pred_check
      _
    $region19: #{mlp_forward.1} parent=1 // pred_check_branch
      %25 = sbr.rel (0) target = $region21
    $region20: #{mlp_forward.1} parent=1 // pred_region
      _
    $region21: #{mlp_forward.1} parent=1 // pred_fallthru
      _
    // Predicated region
    $region22: #{mlp_forward.1} parent=1 // pred_check
      _
    $region23: #{mlp_forward.1} parent=1 // pred_check_branch
      %27 = sbr.rel (0) target = $region25
    $region24: #{mlp_forward.1} parent=1 // pred_region
      _
    $region25: #{mlp_forward.1} parent=1 // pred_fallthru
      _
    // Predicated region
    $region26: #{mlp_forward.1} parent=1 // pred_check
      _
    $region27: #{mlp_forward.1} parent=1 // pred_check_branch
      %29 = sbr.rel (0) target = $region29
    $region28: #{mlp_forward.1} parent=1 // pred_region
      _
    $region29: #{mlp_forward.1} parent=1 // pred_fallthru
      _
    // Predicated region
    $region30: #{mlp_forward.1} parent=1 // pred_check
      _
    $region31: #{mlp_forward.1} parent=1 // pred_check_branch
      %31 = sbr.rel (0) target = $region33
    $region32: #{mlp_forward.1} parent=1 // pred_region
      _
    $region33: #{mlp_forward.1} parent=1 // pred_fallthru
      _
    %v32 = vld [vmem:[%s0] sm:$0xff]
    %v33 = vunpack.c.l.bf16 %v32
    %v34 = vunpack.c.h.bf16 %v32
    %v35 = vld [vmem:[%s1] sm:$0x77]
    %v36 = vunpack.c.l.bf16 %v35
    %v37 = vunpack.c.h.bf16 %v35
    %v38 = vld [vmem:[%s2] sm:$0x3f]
    %40 = vset.pattern.permute.xlu0 0
    %41 = vperm.xlu0 %40, %v38
    %v42 = vpop.permute.xlu0 %41
    %v44 = vperm.slane %v33, 0
    %v45 = vperm.slane %v34, 0
    %v46 = vmul.f32 %v42, %v44
    %v47 = vmul.f32 %v42, %v45
    %v48 = vadd.f32 %v46, 0.0
    %v49 = vadd.f32 %v47, 0.0
    %50 = vset.pattern.permute.xlu0 1
    %51 = vperm.xlu0 %50, %v38
    %v52 = vpop.permute.xlu0 %51
    %v54 = vperm.slane %v33, 1
    %v55 = vperm.slane %v34, 1
    %v56 = vmul.f32 %v52, %v54
    %v57 = vmul.f32 %v52, %v55
    %v58 = vadd.f32 %v48, %v56
    %v59 = vadd.f32 %v49, %v57
    %60 = vset.pattern.permute.xlu0 2
    %61 = vperm.xlu0 %60, %v38
    %v62 = vpop.permute.xlu0 %61
    %v64 = vperm.slane %v33, 2
    %v65 = vperm.slane %v34, 2
    %v66 = vmul.f32 %v62, %v64
    %v67 = vmul.f32 %v62, %v65
    %v68 = vadd.f32 %v58, %v66
    %v69 = vadd.f32 %v59, %v67
    %70 = vset.pattern.permute.xlu0 3
    %71 = vperm.xlu0 %70, %v38
    %v72 = vpop.permute.xlu0 %71
    %v74 = vperm.slane %v33, 3
    %v75 = vperm.slane %v34, 3
    %v76 = vmul.f32 %v72, %v74
    %v77 = vmul.f32 %v72, %v75
    %v78 = vadd.f32 %v68, %v76
    %v79 = vadd.f32 %v69, %v77
    %80 = vset.pattern.permute.xlu0 4
    %81 = vperm.xlu0 %80, %v38
    %v82 = vpop.permute.xlu0 %81
    %v84 = vperm.slane %v33, 4
    %v85 = vperm.slane %v34, 4
    %v86 = vmul.f32 %v82, %v84
    %v87 = vmul.f32 %v82, %v85
    %v88 = vadd.f32 %v78, %v86
    %v89 = vadd.f32 %v79, %v87
    %90 = vset.pattern.permute.xlu0 5
    %91 = vperm.xlu0 %90, %v38
    %v92 = vpop.permute.xlu0 %91
    %v94 = vperm.slane %v33, 5
    %v95 = vperm.slane %v34, 5
    %v96 = vmul.f32 %v92, %v94
    %v97 = vmul.f32 %v92, %v95
    %v98 = vadd.f32 %v88, %v96
    %v99 = vadd.f32 %v89, %v97
    %100 = vset.pattern.permute.xlu0 6
    %101 = vperm.xlu0 %100, %v38
    %v102 = vpop.permute.xlu0 %101
    %v104 = vperm.slane %v33, 6
    %v105 = vperm.slane %v34, 6
    %v106 = vmul.f32 %v102, %v104
    %v107 = vmul.f32 %v102, %v105
    %v108 = vadd.f32 %v98, %v106
    %v109 = vadd.f32 %v99, %v107
    %110 = vset.pattern.permute.xlu0 7
    %111 = vperm.xlu0 %110, %v38
    %v112 = vpop.permute.xlu0 %111
    %v114 = vperm.slane %v33, 7
    %v115 = vperm.slane %v34, 7
    %v116 = vmul.f32 %v112, %v114
    %v117 = vmul.f32 %v112, %v115
    %v118 = vadd.f32 %v108, %v116
    %v119 = vadd.f32 %v109, %v117
    %v120 = vld [vmem:[%s3] sm:$0x3f]
    %122 = vset.pattern.permute.xlu0 0
    %123 = vperm.xlu0 %122, %v120
    %v124 = vpop.permute.xlu0 %123
    %v126 = vadd.f32 %v118, %v124
    %v127 = vadd.f32 %v119, %v124
    %v128 = vmax.f32 %v126, 0.0
    %v129 = vmax.f32 %v127, 0.0
    %v130 = vmul.f32 %v128, %v36
    %v131 = vmul.f32 %v129, %v37
    %v132 = vld [vmem:[%s4] sm:$0xf]
    %134 = vset.pattern.permute.xlu0 0
    %135 = vperm.xlu0 %134, %v132
    %v136 = vpop.permute.xlu0 %135
    %v138 = vperm.slane %v130, 0
    %v139 = vperm.slane %v131, 0
    %v140 = vmul.f32 %v136, %v138
    %v141 = vmul.f32 %v136, %v139
    %v142 = vadd.f32 %v140, 0.0
    %v143 = vadd.f32 %v141, 0.0
    %144 = vset.pattern.permute.xlu0 1
    %145 = vperm.xlu0 %144, %v132
    %v146 = vpop.permute.xlu0 %145
    %v148 = vperm.slane %v130, 1
    %v149 = vperm.slane %v131, 1
    %v150 = vmul.f32 %v146, %v148
    %v151 = vmul.f32 %v146, %v149
    %v152 = vadd.f32 %v142, %v150
    %v153 = vadd.f32 %v143, %v151
    %154 = vset.pattern.permute.xlu0 2
    %155 = vperm.xlu0 %154, %v132
    %v156 = vpop.permute.xlu0 %155
    %v158 = vperm.slane %v130, 2
    %v159 = vperm.slane %v131, 2
    %v160 = vmul.f32 %v156, %v158
    %v161 = vmul.f32 %v156, %v159
    %v162 = vadd.f32 %v152, %v160
    %v163 = vadd.f32 %v153, %v161
    %164 = vset.pattern.permute.xlu0 3
    %165 = vperm.xlu0 %164, %v132
    %v166 = vpop.permute.xlu0 %165
    %v168 = vperm.slane %v130, 3
    %v169 = vperm.slane %v131, 3
    %v170 = vmul.f32 %v166, %v168
    %v171 = vmul.f32 %v166, %v169
    %v172 = vadd.f32 %v162, %v170
    %v173 = vadd.f32 %v163, %v171
    %174 = vset.pattern.permute.xlu0 4
    %175 = vperm.xlu0 %174, %v132
    %v176 = vpop.permute.xlu0 %175
    %v178 = vperm.slane %v130, 4
    %v179 = vperm.slane %v131, 4
    %v180 = vmul.f32 %v176, %v178
    %v181 = vmul.f32 %v176, %v179
    %v182 = vadd.f32 %v172, %v180
    %v183 = vadd.f32 %v173, %v181
    %184 = vset.pattern.permute.xlu0 5
    %185 = vperm.xlu0 %184, %v132
    %v186 = vpop.permute.xlu0 %185
    %v188 = vperm.slane %v130, 5
    %v189 = vperm.slane %v131, 5
    %v190 = vmul.f32 %v186, %v188
    %v191 = vmul.f32 %v186, %v189
    %v192 = vadd.f32 %v182, %v190
    %v193 = vadd.f32 %v183, %v191
    %v194 = vld [vmem:[%s5] sm:$0xf]
    %196 = vset.pattern.permute.xlu0 0
    %197 = vperm.xlu0 %196, %v194
    %v198 = vpop.permute.xlu0 %197
    %v200 = vadd.f32 %v192, %v198
    %v201 = vadd.f32 %v193, %v198
    %v202 = vmax.f32 %v200, 0.0
    %v203 = vmax.f32 %v201, 0.0
    %v204 = vld [vmem:[%s6] sm:$0x1]
    %206 = vset.pattern.permute.xlu0 0
    %207 = vperm.xlu0 %206, %v204
    %v208 = vpop.permute.xlu0 %207
    %v210 = vperm.slane %v208, 0
    %v211 = vmul.f32 %v210, %v202
    %v212 = vmul.f32 %v210, %v203
    %v213 = vadd.f32 %v211, 0.0
    %v214 = vadd.f32 %v212, 0.0
    %215 = vset.pattern.permute.xlu0 1
    %216 = vperm.xlu0 %215, %v204
    %v217 = vpop.permute.xlu0 %216
    %v219 = vperm.slane %v217, 0
    %v220 = vmul.f32 %v219, %v202
    %v221 = vmul.f32 %v219, %v203
    %v224 = vrot.slane %v220, 1
    %v225 = vrot.slane %v221, 1
    %v228 = vadd.f32 %v213, %v224
    %v229 = vadd.f32 %v214, %v225
    %230 = vset.pattern.permute.xlu0 2
    %231 = vperm.xlu0 %230, %v204
    %v232 = vpop.permute.xlu0 %231
    %v234 = vperm.slane %v232, 0
    %v235 = vmul.f32 %v234, %v202
    %v236 = vmul.f32 %v234, %v203
    %v239 = vrot.slane %v235, 2
    %v240 = vrot.slane %v236, 2
    %v243 = vadd.f32 %v228, %v239
    %v244 = vadd.f32 %v229, %v240
    %245 = vset.pattern.permute.xlu0 3
    %246 = vperm.xlu0 %245, %v204
    %v247 = vpop.permute.xlu0 %246
    %v249 = vperm.slane %v247, 0
    %v250 = vmul.f32 %v249, %v202
    %v251 = vmul.f32 %v249, %v203
    %v254 = vrot.slane %v250, 3
    %v255 = vrot.slane %v251, 3
    %v258 = vadd.f32 %v243, %v254
    %v259 = vadd.f32 %v244, %v255
    %v260 = vld [vmem:[#allocation2] sm:$0x1]
    %262 = vset.pattern.permute.xlu0 0
    %263 = vperm.xlu0 %262, %v260
    %v264 = vpop.permute.xlu0 %263
    %v266 = vperm.slane %v264, 0
    %v267 = vadd.f32 %v258, %v266
    %v268 = vadd.f32 %v259, %v266
    %v269 = vxor.u32 %v267, 2147483648
    %v270 = vxor.u32 %v268, 2147483648
    %v271 = vmul.f32 %v269, 1.442695
    %v272 = vpow.pop %v271
    %v273 = vmul.f32 %v270, 1.442695
    %v274 = vpow.pop %v273
    %v275 = vadd.f32 %v272, 1.0
    %v276 = vadd.f32 %v274, 1.0
    %v277 = vrcp.pop %v275
    %v278 = vmul.f32 %v275, %v277
    %v279 = vsub.f32 1.0, %v278
    %v280 = vmul.f32 %v277, %v279
    %v281 = vadd.f32 %v277, %v280
    %vm282 = vweird.f32 %v275
    %vm283 = vweird.f32 %v277
    %vm284 = vmor %vm282, %vm283
    %v285 = vsel %vm284, %v277, %v281
    %v286 = vand.u32 2147483647, %v275
    %vm287 = vcmp.eq.f32.partialorder %v286, 8.507059e+37
    %v288 = vand.u32 %v275, 2147483648
    %v289 = vor.u32 1.1754944e-38, %v288
    %v290 = vsel %vm287, %v289, %v285
    %v291 = vmul.f32 1.0, %v290
    %v292 = vrcp.pop %v276
    %v293 = vmul.f32 %v276, %v292
    %v294 = vsub.f32 1.0, %v293
    %v295 = vmul.f32 %v292, %v294
    %v296 = vadd.f32 %v292, %v295
    %vm297 = vweird.f32 %v276
    %vm298 = vweird.f32 %v292
    %vm299 = vmor %vm297, %vm298
    %v300 = vsel %vm299, %v292, %v296
    %v301 = vand.u32 2147483647, %v276
    %vm302 = vcmp.eq.f32.partialorder %v301, 8.507059e+37
    %v303 = vand.u32 %v276, 2147483648
    %v304 = vor.u32 1.1754944e-38, %v303
    %v305 = vsel %vm302, %v304, %v300
    %v306 = vmul.f32 1.0, %v305
    %v309 = vrot.slane %v306, 7
    %vm310 = vcmask 1040384
    %v311 = vsel %vm310, %v291, %v309
    %v313 = vlaneseq
    %vm314 = vcmp.ge.s32.totalorder %v313, 0
    %vm315 = vcmp.lt.s32.totalorder %v313, 256
    %vm316 = vmand %vm314, %vm315
    %317 = vst.msk [vmem:[#allocation3] sm:$0x3] %vm316, %v311
    // Predicated region
    $region34: #{mlp_forward.1} parent=1 // pred_check
      _
    $region35: #{mlp_forward.1} parent=1 // pred_check_branch
      %319 = sbr.rel (0) target = $region37
    $region36: #{mlp_forward.1} parent=1 // pred_region
      %321 = vsyncadd [#allocation4], 0
      %s323 = sshll.u32 [#allocation3], 4
      %s324 = int_to_ptr.vmem [resolvable:$true] %s323
      %s325 = sshll.u32 %s8, 4
      %s326 = int_to_ptr.hbm [resolvable:$true] %s325
      %328 = dma.vmem_to_hbm [thread:$0]  %s324, 32, %s326, [#allocation4]
    $region37: #{mlp_forward.1} parent=1 // pred_fallthru
      _
    // Predicated region
    $region38: #{mlp_forward.1} parent=1 // pred_check
      _
    $region39: #{mlp_forward.1} parent=1 // pred_check_branch
      %330 = sbr.rel (0) target = $region41
    $region40: #{mlp_forward.1} parent=1 // pred_region
      %332 = dma.done [#allocation4], 32
    $region41: #{mlp_forward.1} parent=1 // pred_fallthru
      _
    %333 = vsyncpa [#allocation4], 1

</llo_original>
